<compile_context>
chip_gen: v5e
topology: v5e:2x2
jax: 0.10.0
libtpu: 0.0.40
codegen_flags: <defaults>
</compile_context>

<pallas_src>
import numpy as np
import jax
import jax.numpy as jnp
from jax.experimental import pallas as pl
from jax.experimental.pallas import tpu as pltpu


# ----------------------------------------------------------------------------
# irreps helpers (plain Python/numpy glue, host-side only)
# ----------------------------------------------------------------------------
def ir_dim(ir):
    l, _p = ir
    return 2 * l + 1


def irreps_dim(irreps):
    return sum(mul * ir_dim(ir) for mul, ir in irreps)


def irreps_slices(irreps):
    sls, off = [], 0
    for mul, ir in irreps:
        d = ir_dim(ir)
        sls.append((off, mul, d))
        off += mul * d
    return sls, off


def selection_rule(ir1, ir2):
    (l1, p1), (l2, p2) = ir1, ir2
    return [(l, p1 * p2) for l in range(abs(l1 - l2), l1 + l2 + 1)]


def wigner_3j(l1, l2, l3):
    """Real-basis Wigner-3j (e3nn component order, l=1 -> (y,z,x)), Frobenius norm 1.

    Only the couplings needed for inputs with l <= 1 are provided.
    """
    # TODO(synk): exact e3nn wigner_3j sign conventions for l_out in {1, 2} are re-derived
    # here (orthonormal CG, possibly differing by per-component signs); validate once
    # against real e3nn on CPU.
    key = (l1, l2, l3)
    if key == (0, 0, 0):
        return np.ones((1, 1, 1))
    if key == (0, 1, 1):
        return np.eye(3)[None, :, :] / np.sqrt(3.0)
    if key == (1, 0, 1):
        return np.eye(3)[:, None, :] / np.sqrt(3.0)
    if key == (1, 1, 0):
        return np.eye(3)[:, :, None] / np.sqrt(3.0)
    if key == (1, 1, 1):
        eps = np.zeros((3, 3, 3))
        for i, j, k in [(0, 1, 2), (1, 2, 0), (2, 0, 1)]:
            eps[i, j, k] = 1.0
            eps[j, i, k] = -1.0
        return eps / np.sqrt(6.0)
    if key == (1, 1, 2):
        # l=1 index order (y, z, x); l=2 order (xy, yz, (2z^2-x^2-y^2)/sqrt(3), zx, x^2-y^2)
        Y, Z, X = 0, 1, 2
        S = np.zeros((3, 3, 5))
        S[X, Y, 0] = S[Y, X, 0] = 1.0
        S[Y, Z, 1] = S[Z, Y, 1] = 1.0
        S[Z, Z, 2] = 2.0 / np.sqrt(3.0)
        S[X, X, 2] = -1.0 / np.sqrt(3.0)
        S[Y, Y, 2] = -1.0 / np.sqrt(3.0)
        S[Z, X, 3] = S[X, Z, 3] = 1.0
        S[X, X, 4] = 1.0
        S[Y, Y, 4] = -1.0
        return S / np.sqrt(10.0)
    raise NotImplementedError(key)


def build_tensor_square(irreps_in):
    """Mirror e3nn.o3.TensorSquare(irreps_in) instruction construction (no weights)."""
    out, instr = [], []
    for i1, (mul1, ir1) in enumerate(irreps_in):
        for i2, (mul2, ir2) in enumerate(irreps_in):
            if i1 < i2:
                for ir_out in selection_rule(ir1, ir2):
                    i_out = len(out)
                    out.append((mul1 * mul2, ir_out))
                    instr.append((i1, i2, i_out, "uvuv"))
            elif i1 == i2:
                for ir_out in selection_rule(ir1, ir2):
                    l_out, _ = ir_out
                    if l_out % 2 == 0:  # symmetric part
                        i_out = len(out)
                        out.append((mul1, ir_out))
                        instr.append((i1, i1, i_out, "uuu"))
                        if mul1 > 1:
                            i_out = len(out)
                            out.append((mul1 * (mul1 - 1) // 2, ir_out))
                            instr.append((i1, i1, i_out, "uvu<v"))
                    else:  # only off-diagonal pairs survive for odd l_out
                        if mul1 > 1:
                            i_out = len(out)
                            out.append((mul1 * (mul1 - 1) // 2, ir_out))
                            instr.append((i1, i1, i_out, "uvu<v"))

    # stable sort of output irreps (e3nn Irreps.sort(), no simplify)
    def ir_key(ir):
        l, p = ir
        return (l, -p * (-1) ** l)

    order = sorted(range(len(out)), key=lambda i: ir_key(out[i][1]))
    perm = [0] * len(out)
    for new, old in enumerate(order):
        perm[old] = new
    out_sorted = [out[i] for i in order]
    instr = [(i1, i2, perm[io], mode) for (i1, i2, io, mode) in instr]
    return out_sorted, instr


def build_cg_matrix(irreps_in, irreps_out, instructions):
    """W such that tensor_square(x)[k] = sum_ij W[k, i, j] x_i x_j (per factor slice)."""
    in_sl, d_in = irreps_slices(irreps_in)
    out_sl, d_out = irreps_slices(irreps_out)
    W = np.zeros((d_out, d_in, d_in), dtype=np.float64)
    for (i1, i2, io, mode) in instructions:
        o1, m1, d1 = in_sl[i1]
        o2, m2, d2 = in_sl[i2]
        oo, _mo, do = out_sl[io]
        C = wigner_3j((d1 - 1) // 2, (d2 - 1) // 2, (do - 1) // 2)  # (d1, d2, do)
        pw = np.sqrt(do)  # 'component' normalization, single path per output
        Ck = pw * np.transpose(C, (2, 0, 1))  # (do, d1, d2)
        if mode == "uuu":
            for u in range(m1):
                W[oo + u * do: oo + (u + 1) * do,
                  o1 + u * d1: o1 + (u + 1) * d1,
                  o2 + u * d2: o2 + (u + 1) * d2] += Ck
        elif mode == "uvu<v":
            w = 0
            for u in range(m1):
                for v in range(u + 1, m2):
                    W[oo + w * do: oo + (w + 1) * do,
                      o1 + u * d1: o1 + (u + 1) * d1,
                      o2 + v * d2: o2 + (v + 1) * d2] += Ck
                    w += 1
        elif mode == "uvuv":
            for u in range(m1):
                for v in range(m2):
                    w = u * m2 + v
                    W[oo + w * do: oo + (w + 1) * do,
                      o1 + u * d1: o1 + (u + 1) * d1,
                      o2 + v * d2: o2 + (v + 1) * d2] += Ck
        else:
            raise NotImplementedError(mode)
    return W


def build_folded_weight(irreps_sq, factor, W):
    """Fold AxisToMul into the CG matrix.

    Returns W_big of shape (factor * d_in_f^2, factor * d_out_f) such that
        out_final[n, :] = z[n, :] @ W_big
    with quadratic features z[n, f*d_in_f^2 + i*d_in_f + j] = x_f[n, i] * x_f[n, j]
    and out_final in the module's final (AxisToMul) column layout.
    """
    d_out_f, d_in_f, _ = W.shape
    W2 = np.transpose(W, (1, 2, 0)).reshape(d_in_f * d_in_f, d_out_f)  # row i*d+j -> W[k,i,j]
    out_sl, _ = irreps_slices(irreps_sq)
    W_big = np.zeros((factor * d_in_f * d_in_f, factor * d_out_f), dtype=np.float64)
    off_final = 0
    for (off_b, mul_b, d_b) in out_sl:
        w_b = mul_b * d_b
        for f in range(factor):
            W_big[f * d_in_f * d_in_f:(f + 1) * d_in_f * d_in_f,
                  off_final + f * w_b: off_final + (f + 1) * w_b] = W2[:, off_b: off_b + w_b]
        off_final += factor * w_b
    return W_big


def input_factor_slices(irreps_in, factor):
    """MulToAxis as static column slices: for each factor f, the list of (start, width)
    contiguous column runs of the raw (N, irreps_in.dim) row that make up x_f."""
    slices = []
    for f in range(factor):
        sls, off = [], 0
        for mul, ir in irreps_in:
            d = ir_dim(ir)
            w = (mul // factor) * d
            sls.append((off + f * w, w))
            off += mul * d
        slices.append(sls)
    return slices


def build_selection_matrices(irreps_in, factor):
    """0/1 selection matrices (d_in_total, factor*d_in_f^2) such that
         (x @ S_A)[:, f*d^2 + i*d + j] = x_f[:, i]
         (x @ S_B)[:, f*d^2 + i*d + j] = x_f[:, j]
    i.e. the MulToAxis per-factor column gather is folded into the selection."""
    d_in_total = irreps_dim(irreps_in)
    col_slices = input_factor_slices(irreps_in, factor)
    d_in_f = sum(w for (_s, w) in col_slices[0])
    K = factor * d_in_f * d_in_f
    S_A = np.zeros((d_in_total, K), dtype=np.float32)
    S_B = np.zeros((d_in_total, K), dtype=np.float32)
    for f in range(factor):
        cols = []
        for (start, width) in col_slices[f]:
            cols.extend(range(start, start + width))
        for i in range(d_in_f):
            for j in range(d_in_f):
                k = f * d_in_f * d_in_f + i * d_in_f + j
                S_A[cols[i], k] = 1.0
                S_B[cols[j], k] = 1.0
    return S_A, S_B


# ----------------------------------------------------------------------------
# MulToAxis / AxisToMul (pure reshape glue) - used ONLY by the pure-JAX reference.
# ----------------------------------------------------------------------------
def mul_to_axis(x, irreps, factor):
    n = x.shape[0]
    chunks, off = [], 0
    for mul, ir in irreps:
        d = ir_dim(ir)
        blk = x[:, off:off + mul * d].reshape(n, factor, (mul // factor) * d)
        chunks.append(blk)
        off += mul * d
    return jnp.concatenate(chunks, axis=-1)


def axis_to_mul(x, irreps, factor):
    n = x.shape[0]
    chunks, off = [], 0
    for mul, ir in irreps:
        d = ir_dim(ir)
        blk = x[:, :, off:off + mul * d].reshape(n, factor * mul * d)
        chunks.append(blk)
        off += mul * d
    return jnp.concatenate(chunks, axis=-1)


# ----------------------------------------------------------------------------
# Pallas kernels: fused MulToAxis + TensorSquare + AxisToMul.
# Per row tile: z = (x @ S_A) * (x @ S_B) (lane-dense, MulToAxis folded into S),
# then out = z @ W_big (CG square + AxisToMul folded into W_big).
# ----------------------------------------------------------------------------
def _fast3_kernel(x_ref, sa_ref, sb_ref, whi_ref, wlo_ref, o_ref):
    """Default fast path: explicit 3-pass bf16 CG matmul with f32 accumulation."""
    f32, bf16 = jnp.float32, jnp.bfloat16
    x = x_ref[...]                                   # (TN, 32) f32 (no redundant cast)
    # Two-term bf16 split of x (x ~= x_hi + x_lo, residual ~2^-17 |x|): keeps the 0/1
    # selection matmuls on the single-pass bf16 MXU path.
    x_hi = x.astype(bf16)
    x_lo = (x - x_hi.astype(f32)).astype(bf16)
    sa = sa_ref[...]                                 # (32, 256) bf16, 0/1 -> exact
    sb = sb_ref[...]
    # Lane-dense quadratic features:
    #   a[:, f*64 + i*8 + j] = x_f[:, i]    b[:, f*64 + i*8 + j] = x_f[:, j]
    a = (jnp.dot(x_hi, sa, preferred_element_type=f32)
         + jnp.dot(x_lo, sa, preferred_element_type=f32))
    b = (jnp.dot(x_hi, sb, preferred_element_type=f32)
         + jnp.dot(x_lo, sb, preferred_element_type=f32))
    z = a * b                                        # (TN, 256) one full-width VPU multiply
    # Explicit 3-pass bf16 matmul with f32 accumulation (the "Precision.HIGH" algorithm,
    # spelled out manually because Mosaic only lowers DEFAULT / HIGHEST dot precisions).
    z_hi = z.astype(bf16)
    z_lo = (z - z_hi.astype(f32)).astype(bf16)
    w_hi = whi_ref[...]                              # (256, 144) bf16 hi/lo split of W_big
    w_lo = wlo_ref[...]
    out = (jnp.dot(z_hi, w_hi, preferred_element_type=f32)
           + jnp.dot(z_lo, w_hi, preferred_element_type=f32)
           + jnp.dot(z_hi, w_lo, preferred_element_type=f32))
    o_ref[...] = out.astype(o_ref.dtype)             # no-op when the output dtype is f32


def _highest_kernel(x_ref, sa_ref, sb_ref, w_ref, o_ref):
    """Strict-f32 path: exact 3-term selection split + HIGHEST-precision CG matmul."""
    f32, bf16 = jnp.float32, jnp.bfloat16
    x = x_ref[...]
    x_hi = x.astype(bf16)
    r1 = x - x_hi.astype(f32)
    x_mid = r1.astype(bf16)
    x_lo = (r1 - x_mid.astype(f32)).astype(bf16)     # x == x_hi + x_mid + x_lo exactly

    def select(s):
        return (jnp.dot(x_hi, s, preferred_element_type=f32)
                + jnp.dot(x_mid, s, preferred_element_type=f32)
                + jnp.dot(x_lo, s, preferred_element_type=f32))

    a = select(sa_ref[...])
    b = select(sb_ref[...])
    z = a * b
    out = jnp.dot(z, w_ref[...], preferred_element_type=f32,
                  precision=jax.lax.Precision.HIGHEST)
    o_ref[...] = out.astype(o_ref.dtype)


def _round_up(v, m):
    return ((v + m - 1) // m) * m


def tensor_square_forward_pallas(x, consts, kernel, d_out, *, tile_n=2048,
                                 out_dtype=jnp.float32):
    n, d_in_total = x.shape
    if x.dtype != jnp.float32:
        x = x.astype(jnp.float32)    # hoisted cast; the kernel body stays cast-free

    # Large row tiles amortize the ~0.35us per-grid-step overhead.  16-row granularity is
    # layout-safe for both f32 (8,128) and bf16 (16,128) output blocks.  No jnp.pad/out[:n]
    # copies: Pallas masks the partial tail block itself (rows are independent, so garbage
    # tail-row reads are harmless and their outputs are dropped on writeback).
    tn = min(tile_n, _round_up(max(n, 1), 16))
    # v7x has two TensorCores per chip: for mid/large batches guarantee >= 2 grid steps so
    # the "parallel" axis can be sharded across both cores (no effect on v5e/v6e).
    if n >= 1024:
        tn = min(tn, _round_up((n + 1) // 2, 16))
    grid = pl.cdiv(n, tn)

    in_specs = [pl.BlockSpec((tn, d_in_total), lambda i: (i, 0))]
    for c in consts:
        # constant index_map -> the small selection / CG weights stay VMEM-resident across
        # grid steps (no re-DMA when the block index does not change).
        in_specs.append(pl.BlockSpec(c.shape, lambda i: (0, 0)))

    return pl.pallas_call(
        kernel,
        out_shape=jax.ShapeDtypeStruct((n, d_out), out_dtype),
        grid_spec=pltpu.PrefetchScalarGridSpec(
            num_scalar_prefetch=0,
            grid=(grid,),
            in_specs=in_specs,
            out_specs=pl.BlockSpec((tn, d_out), lambda i: (i, 0)),
        ),
        compiler_params=pltpu.CompilerParams(
            # rows are independent -> megacore / v7x dual-TC sharding when grid > 1
            dimension_semantics=("parallel",),
            # ~13 MB live per 2048-row step (I/O double-buffers + f32 a/b/z intermediates):
            # lift v5e's 16 MiB scoped default, stay well under v7x's 64 MiB physical VMEM.
            vmem_limit_bytes=48 * 1024 * 1024,
        ),
    )(x, *consts)


# ----------------------------------------------------------------------------
# Module wrapper (weight-free: fixed CG / selection matrices, built host-side)
# ----------------------------------------------------------------------------
class TensorSquarePallas:
    def __init__(self, irreps_in, mul_factor, tile_n=2048, precision="fast3"):
        self.irreps_in = list(irreps_in)
        self.factor = mul_factor
        self.tile_n = tile_n
        self.precision = precision
        for mul, _ir in self.irreps_in:
            assert mul % mul_factor == 0
        self.irreps_factored = [(mul // mul_factor, ir) for mul, ir in self.irreps_in]
        self.irreps_sq, instructions = build_tensor_square(self.irreps_factored)
        w = build_cg_matrix(self.irreps_factored, self.irreps_sq, instructions)

        self.d_in_f = irreps_dim(self.irreps_factored)      # per-factor input dim  (8)
        self.d_out_f = irreps_dim(self.irreps_sq)           # per-factor output dim (36)
        self.d_in = irreps_dim(self.irreps_in)              # 32
        self.d_out = mul_factor * self.d_out_f              # 144
        self.irreps_out = [(mul_factor * mul, ir) for mul, ir in self.irreps_sq]

        self.w_full = jnp.asarray(w, dtype=jnp.float32)      # (36, 8, 8) raw CG (reference)

        # (256, 144) folded weight: CG square + AxisToMul permutation baked in.
        w_big = build_folded_weight(self.irreps_sq, mul_factor, w)
        self.w_f32 = jnp.asarray(w_big, dtype=jnp.float32)
        # bf16 hi/lo split for the explicit 3-pass path.
        self.w_hi = self.w_f32.astype(jnp.bfloat16)
        self.w_lo = (self.w_f32 - self.w_hi.astype(jnp.float32)).astype(jnp.bfloat16)

        # (32, 256) 0/1 selection matrices (exact in bf16); MulToAxis gather folded in.
        s_a, s_b = build_selection_matrices(self.irreps_in, mul_factor)
        self.s_a = jnp.asarray(s_a, dtype=jnp.bfloat16)
        self.s_b = jnp.asarray(s_b, dtype=jnp.bfloat16)

    def __call__(self, x, tile_n=None, out_dtype=jnp.float32, precision=None):
        prec = self.precision if precision is None else precision
        tn = self.tile_n if tile_n is None else tile_n
        if prec == "fast3":
            consts = (self.s_a, self.s_b, self.w_hi, self.w_lo)
            kernel = _fast3_kernel
        elif prec == "highest":
            consts = (self.s_a, self.s_b, self.w_f32)
            kernel = _highest_kernel
        else:
            raise ValueError(f"unknown precision mode: {prec!r}")
        return tensor_square_forward_pallas(x, consts, kernel, self.d_out,
                                            tile_n=tn, out_dtype=out_dtype)


def reference_forward(mod, x):
    """Pure-JAX reference: explicit MulToAxis -> einsum against the raw CG -> AxisToMul.
    Exercises a different code path than the folded/selection weights used by the kernel."""
    xf = mul_to_axis(x, mod.irreps_in, mod.factor)
    sq = jnp.einsum("kij,nfi,nfj->nfk", mod.w_full, xf, xf,
                    precision=jax.lax.Precision.HIGHEST)
    return axis_to_mul(sq, mod.irreps_sq, mod.factor)


if __name__ == "__main__":
    irreps_in = [(8, (0, 1)), (8, (1, -1))]  # 8x0e + 8x1o, feature dim 32
    mul_factor = 4
    mod = TensorSquarePallas(irreps_in, mul_factor)

    key = jax.random.PRNGKey(0)
    k1, k2 = jax.random.split(key)

    # --- small batch, single grid step -------------------------------------------------
    x = jax.random.normal(k1, (32, irreps_dim(irreps_in)), dtype=jnp.float32)  # (32, 32)
    ref = reference_forward(mod, x)
    scale = 1.0 + float(jnp.max(jnp.abs(ref)))

    y_fast = jax.block_until_ready(mod(x))                       # default fast (3-pass) path
    assert y_fast.shape == (32, irreps_dim(mod.irreps_out)), y_fast.shape   # (32, 144)
    err_fast = float(jnp.max(jnp.abs(y_fast - ref)))
    # explicit-3-pass bf16 precision class (~1e-4 relative-of-scale worst case);
    # a single-pass bf16 matmul (~1e-2 class) would fail this bound.
    assert err_fast <= 2e-3 * scale, (err_fast, scale)

    y_hi = jax.block_until_ready(mod(x, precision="highest"))    # strict-f32 path
    err_hi = float(jnp.max(jnp.abs(y_hi - ref)))
    assert err_hi <= 1e-4 * scale, (err_hi, scale)

    # --- larger batch, multi-step grid with a partial tail block (300 % 128 != 0) ------
    x2 = jax.random.normal(k2, (300, irreps_dim(irreps_in)), dtype=jnp.float32)
    ref2 = reference_forward(mod, x2)
    scale2 = 1.0 + float(jnp.max(jnp.abs(ref2)))

    y2 = jax.block_until_ready(mod(x2, tile_n=128))              # tiny tile: test-only
    assert y2.shape == (300, irreps_dim(mod.irreps_out)), y2.shape
    err2 = float(jnp.max(jnp.abs(y2 - ref2)))
    assert err2 <= 2e-3 * scale2, (err2, scale2)

    y2_hi = jax.block_until_ready(mod(x2, tile_n=128, precision="highest"))
    err2_hi = float(jnp.max(jnp.abs(y2_hi - ref2)))
    assert err2_hi <= 1e-4 * scale2, (err2_hi, scale2)

    print("KERNEL_OK")
</pallas_src>

<mosaic_0001>
module attributes {stable_mosaic.version = 11 : i64} {
  func.func @_fast3_kernel(%arg0: i32, %arg1: memref<32x32xf32, #tpu.memory_space<vmem>>, %arg2: memref<32x256xbf16, #tpu.memory_space<vmem>>, %arg3: memref<32x256xbf16, #tpu.memory_space<vmem>>, %arg4: memref<256x144xbf16, #tpu.memory_space<vmem>>, %arg5: memref<256x144xbf16, #tpu.memory_space<vmem>>, %arg6: memref<32x144xf32, #tpu.memory_space<vmem>>) attributes {dimension_semantics = [#tpu.dimension_semantics<parallel>], iteration_bounds = array<i64: 1>, scalar_prefetch = 0 : i64, scratch_operands = 0 : i64, tpu.core_type = #tpu.core_type<tc>, window_params = [{transform_indices = @transform_0, window_bounds = array<i64: 32, 32>}, {pipeline_mode = #tpu.pipeline_mode<synchronous>, transform_indices = @transform_1, window_bounds = array<i64: 32, 256>}, {pipeline_mode = #tpu.pipeline_mode<synchronous>, transform_indices = @transform_2, window_bounds = array<i64: 32, 256>}, {pipeline_mode = #tpu.pipeline_mode<synchronous>, transform_indices = @transform_3, window_bounds = array<i64: 256, 144>}, {pipeline_mode = #tpu.pipeline_mode<synchronous>, transform_indices = @transform_4, window_bounds = array<i64: 256, 144>}, {transform_indices = @transform_5, window_bounds = array<i64: 32, 144>}]} {
    %c0 = arith.constant 0 : index
    %c0_0 = arith.constant 0 : index
    %0 = vector.load %arg1[%c0, %c0_0] : memref<32x32xf32, #tpu.memory_space<vmem>>, vector<32x32xf32>
    %1 = arith.truncf %0 : vector<32x32xf32> to vector<32x32xbf16>
    %2 = arith.extf %1 : vector<32x32xbf16> to vector<32x32xf32>
    %3 = arith.subf %0, %2 : vector<32x32xf32>
    %4 = arith.truncf %3 : vector<32x32xf32> to vector<32x32xbf16>
    %c0_1 = arith.constant 0 : index
    %c0_2 = arith.constant 0 : index
    %5 = vector.load %arg2[%c0_1, %c0_2] : memref<32x256xbf16, #tpu.memory_space<vmem>>, vector<32x256xbf16>
    %c0_3 = arith.constant 0 : index
    %c0_4 = arith.constant 0 : index
    %6 = vector.load %arg3[%c0_3, %c0_4] : memref<32x256xbf16, #tpu.memory_space<vmem>>, vector<32x256xbf16>
    %cst = arith.constant dense<0.000000e+00> : vector<32x256xf32>
    %7 = tpu.matmul %1, %5, %cst {dimension_numbers = #tpu.dot_dimension_numbers<[1], [0], [0], [1], [0, 0, 1, 1], [], []>} : vector<32x32xbf16>, vector<32x256xbf16>, vector<32x256xf32> -> vector<32x256xf32>
    %cst_5 = arith.constant dense<0.000000e+00> : vector<32x256xf32>
    %8 = tpu.matmul %4, %5, %cst_5 {dimension_numbers = #tpu.dot_dimension_numbers<[1], [0], [0], [1], [0, 0, 1, 1], [], []>} : vector<32x32xbf16>, vector<32x256xbf16>, vector<32x256xf32> -> vector<32x256xf32>
    %9 = arith.addf %7, %8 : vector<32x256xf32>
    %cst_6 = arith.constant dense<0.000000e+00> : vector<32x256xf32>
    %10 = tpu.matmul %1, %6, %cst_6 {dimension_numbers = #tpu.dot_dimension_numbers<[1], [0], [0], [1], [0, 0, 1, 1], [], []>} : vector<32x32xbf16>, vector<32x256xbf16>, vector<32x256xf32> -> vector<32x256xf32>
    %cst_7 = arith.constant dense<0.000000e+00> : vector<32x256xf32>
    %11 = tpu.matmul %4, %6, %cst_7 {dimension_numbers = #tpu.dot_dimension_numbers<[1], [0], [0], [1], [0, 0, 1, 1], [], []>} : vector<32x32xbf16>, vector<32x256xbf16>, vector<32x256xf32> -> vector<32x256xf32>
    %12 = arith.addf %10, %11 : vector<32x256xf32>
    %13 = arith.mulf %9, %12 : vector<32x256xf32>
    %14 = arith.truncf %13 : vector<32x256xf32> to vector<32x256xbf16>
    %15 = arith.extf %14 : vector<32x256xbf16> to vector<32x256xf32>
    %16 = arith.subf %13, %15 : vector<32x256xf32>
    %17 = arith.truncf %16 : vector<32x256xf32> to vector<32x256xbf16>
    %c0_8 = arith.constant 0 : index
    %c0_9 = arith.constant 0 : index
    %18 = vector.load %arg4[%c0_8, %c0_9] : memref<256x144xbf16, #tpu.memory_space<vmem>>, vector<256x144xbf16>
    %c0_10 = arith.constant 0 : index
    %c0_11 = arith.constant 0 : index
    %19 = vector.load %arg5[%c0_10, %c0_11] : memref<256x144xbf16, #tpu.memory_space<vmem>>, vector<256x144xbf16>
    %cst_12 = arith.constant dense<0.000000e+00> : vector<32x144xf32>
    %20 = tpu.matmul %14, %18, %cst_12 {dimension_numbers = #tpu.dot_dimension_numbers<[1], [0], [0], [1], [0, 0, 1, 1], [], []>} : vector<32x256xbf16>, vector<256x144xbf16>, vector<32x144xf32> -> vector<32x144xf32>
    %cst_13 = arith.constant dense<0.000000e+00> : vector<32x144xf32>
    %21 = tpu.matmul %17, %18, %cst_13 {dimension_numbers = #tpu.dot_dimension_numbers<[1], [0], [0], [1], [0, 0, 1, 1], [], []>} : vector<32x256xbf16>, vector<256x144xbf16>, vector<32x144xf32> -> vector<32x144xf32>
    %22 = arith.addf %20, %21 : vector<32x144xf32>
    %cst_14 = arith.constant dense<0.000000e+00> : vector<32x144xf32>
    %23 = tpu.matmul %14, %19, %cst_14 {dimension_numbers = #tpu.dot_dimension_numbers<[1], [0], [0], [1], [0, 0, 1, 1], [], []>} : vector<32x256xbf16>, vector<256x144xbf16>, vector<32x144xf32> -> vector<32x144xf32>
    %24 = arith.addf %22, %23 : vector<32x144xf32>
    %c0_15 = arith.constant 0 : index
    %c0_16 = arith.constant 0 : index
    %25 = vector.load %arg6[%c0_15, %c0_16] : memref<32x144xf32, #tpu.memory_space<vmem>>, vector<32x144xf32>
    tpu.vector_store %arg6[%c0_15, %c0_16], %24 {strides = array<i32>} : memref<32x144xf32, #tpu.memory_space<vmem>>, vector<32x144xf32>,
    return
  }
  func.func @transform_0(%arg0: i32) -> (i32, i32) {
    %c0_i32 = arith.constant 0 : i32
    %c0_i32_0 = arith.constant 0 : i32
    return %arg0, %c0_i32 : i32, i32
  }
  func.func @transform_1(%arg0: i32) -> (i32, i32) {
    %c0_i32 = arith.constant 0 : i32
    %c0_i32_0 = arith.constant 0 : i32
    %c0_i32_1 = arith.constant 0 : i32
    return %c0_i32, %c0_i32_0 : i32, i32
  }
  func.func @transform_2(%arg0: i32) -> (i32, i32) {
    %c0_i32 = arith.constant 0 : i32
    %c0_i32_0 = arith.constant 0 : i32
    %c0_i32_1 = arith.constant 0 : i32
    return %c0_i32, %c0_i32_0 : i32, i32
  }
  func.func @transform_3(%arg0: i32) -> (i32, i32) {
    %c0_i32 = arith.constant 0 : i32
    %c0_i32_0 = arith.constant 0 : i32
    %c0_i32_1 = arith.constant 0 : i32
    return %c0_i32, %c0_i32_0 : i32, i32
  }
  func.func @transform_4(%arg0: i32) -> (i32, i32) {
    %c0_i32 = arith.constant 0 : i32
    %c0_i32_0 = arith.constant 0 : i32
    %c0_i32_1 = arith.constant 0 : i32
    return %c0_i32, %c0_i32_0 : i32, i32
  }
  func.func @transform_5(%arg0: i32) -> (i32, i32) {
    %c0_i32 = arith.constant 0 : i32
    %c0_i32_0 = arith.constant 0 : i32
    return %arg0, %c0_i32 : i32, i32
  }
}

</mosaic_0001>

<llo_original>
// kernel: tpu_custom_call.1
$region0: #{tpu_custom_call.1}
  #allocation0 [shape = 'u32[]', space=smem, size = 0x4, offset = 0x4, fixed_abs, tag = 'smem constant byte address 0x4 - core index']
  #allocation1 [shape = 'u32[72,128]{1,0:T(1,128)}', space=vmem, size = 0x9000, scoped, tag = 'internal scratch']
  %s0 = inlined_call_operand.vmem [shape: f32[32,32], index: 0, kind: input, shape index: {}]
  %s1 = inlined_call_operand.vmem [shape: bf16[32,256], index: 1, kind: input, shape index: {}]
  %s2 = inlined_call_operand.vmem [shape: bf16[32,256], index: 2, kind: input, shape index: {}]
  %s3 = inlined_call_operand.vmem [shape: bf16[256,144], index: 3, kind: input, shape index: {}]
  %s4 = inlined_call_operand.vmem [shape: bf16[256,144], index: 4, kind: input, shape index: {}]
  %s5 = inlined_call_operand.hbm [shape: f32[32,144], index: 5, kind: output, shape index: {}]
  %s6 = sld [smem:[#allocation0]]
  $region30: #{tpu_custom_call.1} parent=0
    _
  %s8 = ssub.s32 1, %s6
  %s9 = scalar_select 0, %s8, %s6
  $region1: #{tpu_custom_call.1} parent=0
    #allocation2 [shape = 'u8[32768]{0}', space=vmem, size = 0x8000, scoped, tag = 'output window, operand 0, single buffered']
    #allocation3 [shape = 's32[1]{0}', space=sflag, size = 0x4, scoped, tag = 'scoped memory for tpu_custom_call.1']
    %10 = vsyncpa [#allocation3], 0
    // Predicated region
    $region2: #{tpu_custom_call.1} parent=1 // pred_check
      _
    $region3: #{tpu_custom_call.1} parent=1 // pred_check_branch
      %12 = sbr.rel (0) target = $region5
    $region4: #{tpu_custom_call.1} parent=1 // pred_region
      _
    $region5: #{tpu_custom_call.1} parent=1 // pred_fallthru
      _
    // Predicated region
    $region6: #{tpu_custom_call.1} parent=1 // pred_check
      _
    $region7: #{tpu_custom_call.1} parent=1 // pred_check_branch
      %14 = sbr.rel (0) target = $region9
    $region8: #{tpu_custom_call.1} parent=1 // pred_region
      _
    $region9: #{tpu_custom_call.1} parent=1 // pred_fallthru
      _
    // Predicated region
    $region10: #{tpu_custom_call.1} parent=1 // pred_check
      _
    $region11: #{tpu_custom_call.1} parent=1 // pred_check_branch
      %16 = sbr.rel (0) target = $region13
    $region12: #{tpu_custom_call.1} parent=1 // pred_region
      _
    $region13: #{tpu_custom_call.1} parent=1 // pred_fallthru
      _
    // Predicated region
    $region14: #{tpu_custom_call.1} parent=1 // pred_check
      _
    $region15: #{tpu_custom_call.1} parent=1 // pred_check_branch
      %18 = sbr.rel (0) target = $region17
    $region16: #{tpu_custom_call.1} parent=1 // pred_region
      _
    $region17: #{tpu_custom_call.1} parent=1 // pred_fallthru
      _
    // Predicated region
    $region18: #{tpu_custom_call.1} parent=1 // pred_check
      _
    $region19: #{tpu_custom_call.1} parent=1 // pred_check_branch
      %20 = sbr.rel (0) target = $region21
    $region20: #{tpu_custom_call.1} parent=1 // pred_region
      _
    $region21: #{tpu_custom_call.1} parent=1 // pred_fallthru
      _
    %v22 = vld [vmem:[%s0] sm:$0xff]
    %v23 = vld [vmem:[%s0 + $0x8] sm:$0xff]
    %v24 = vld [vmem:[%s0 + $0x10] sm:$0xff]
    %v25 = vld [vmem:[%s0 + $0x18] sm:$0xff]
    %v26 = vpack.c.bf16 %v22, %v22
    %v27 = vpack.c.bf16 %v23, %v23
    %v28 = vpack.c.bf16 %v24, %v24
    %v29 = vpack.c.bf16 %v25, %v25
    %v30 = vunpack.c.l.bf16 %v26
    %v31 = vunpack.c.l.bf16 %v27
    %v32 = vunpack.c.l.bf16 %v28
    %v33 = vunpack.c.l.bf16 %v29
    %v34 = vsub.f32 %v22, %v30
    %v35 = vsub.f32 %v23, %v31
    %v36 = vsub.f32 %v24, %v32
    %v37 = vsub.f32 %v25, %v33
    %v38 = vpack.c.bf16 %v35, %v34
    %v39 = vpack.c.bf16 %v37, %v36
    %v40 = vld [vmem:[%s1] sm:$0xff]
    %v41 = vld [vmem:[%s1 + $0x8] sm:$0xff]
    %v42 = vld [vmem:[%s1 + $0x10] sm:$0xff]
    %v43 = vld [vmem:[%s1 + $0x18] sm:$0xff]
    %v44 = vld [vmem:[%s2] sm:$0xff]
    %v45 = vld [vmem:[%s2 + $0x8] sm:$0xff]
    %v46 = vld [vmem:[%s2 + $0x10] sm:$0xff]
    %v47 = vld [vmem:[%s2 + $0x18] sm:$0xff]
    %v52 = vunpack.c.l.b16 %v40
    %v53 = vunpack.c.h.b16 %v40
    %v54 = vunpack.c.l.b16 %v41
    %v55 = vunpack.c.h.b16 %v41
    %v56 = vunpack.c.l.b16 %v42
    %v57 = vunpack.c.h.b16 %v42
    %v58 = vunpack.c.l.b16 %v43
    %v59 = vunpack.c.h.b16 %v43
    %v60 = vpack.c.b16 %v54, %v52
    %v61 = vpack.c.b16 %v55, %v53
    %v62 = vpack.c.b16 %v58, %v56
    %v63 = vpack.c.b16 %v59, %v57
    %vm68 = vcmask 261120
    %v70 = vsel %vm68, %v38, 0
    %v73 = vsel %vm68, %v39, 0
    %75 = vmatpush.bf16.msra.mxu0 0
    %76 = vmatpush.bf16.msra.mxu0 0
    %77 = vmatpush.bf16.msra.mxu0 0
    %78 = vmatpush.bf16.msra.mxu0 0
    %79 = vmatpush.bf16.msra.mxu0 0
    %80 = vmatpush.bf16.msra.mxu0 0
    %81 = vmatpush.bf16.msra.mxu0 %v62
    %82 = vmatpush.bf16.msra.mxu0 %v60
    %83 = vmatmul.bf16.gmra.mxu0 %v70
    %v84 = vpop.f32.mrf.mxu0
    %v85 = vadd.f32 0.0, %v84
    %v86 = vpop.f32.mrf.mxu0
    %v87 = vadd.f32 0.0, %v86
    %88 = vmatmul.bf16.gmra.mxu0 %v73
    %v89 = vpop.f32.mrf.mxu0
    %v90 = vadd.f32 0.0, %v89
    %v91 = vpop.f32.mrf.mxu0
    %v92 = vadd.f32 0.0, %v91
    %93 = vdwg.mxu0
    %94 = vmatpush.bf16.msra.mxu0 0
    %95 = vmatpush.bf16.msra.mxu0 0
    %96 = vmatpush.bf16.msra.mxu0 0
    %97 = vmatpush.bf16.msra.mxu0 0
    %98 = vmatpush.bf16.msra.mxu0 0
    %99 = vmatpush.bf16.msra.mxu0 0
    %100 = vmatpush.bf16.msra.mxu0 %v63
    %101 = vmatpush.bf16.msra.mxu0 %v61
    %102 = vmatmul.bf16.gmra.mxu0 %v70
    %v103 = vpop.f32.mrf.mxu0
    %v104 = vadd.f32 0.0, %v103
    %v105 = vpop.f32.mrf.mxu0
    %v106 = vadd.f32 0.0, %v105
    %107 = vmatmul.bf16.gmra.mxu0 %v73
    %v108 = vpop.f32.mrf.mxu0
    %v109 = vadd.f32 0.0, %v108
    %v110 = vpop.f32.mrf.mxu0
    %v111 = vadd.f32 0.0, %v110
    %112 = vdwg.mxu0
    %v117 = vunpack.c.l.b16 %v26
    %v118 = vunpack.c.l.b16 %v27
    %v119 = vunpack.c.l.b16 %v28
    %v120 = vunpack.c.l.b16 %v29
    %v121 = vpack.c.b16 %v118, %v117
    %v122 = vpack.c.b16 %v120, %v119
    %v124 = vsel %vm68, %v121, 0
    %v127 = vsel %vm68, %v122, 0
    %129 = vmatpush.bf16.msra.mxu0 0
    %130 = vmatpush.bf16.msra.mxu0 0
    %131 = vmatpush.bf16.msra.mxu0 0
    %132 = vmatpush.bf16.msra.mxu0 0
    %133 = vmatpush.bf16.msra.mxu0 0
    %134 = vmatpush.bf16.msra.mxu0 0
    %135 = vmatpush.bf16.msra.mxu0 %v62
    %136 = vmatpush.bf16.msra.mxu0 %v60
    %137 = vmatmul.bf16.gmra.mxu0 %v124
    %v138 = vpop.f32.mrf.mxu0
    %v139 = vadd.f32 %v85, %v138
    %v140 = vpop.f32.mrf.mxu0
    %v141 = vadd.f32 %v87, %v140
    %142 = vmatmul.bf16.gmra.mxu0 %v127
    %v143 = vpop.f32.mrf.mxu0
    %v144 = vadd.f32 %v90, %v143
    %v145 = vpop.f32.mrf.mxu0
    %v146 = vadd.f32 %v92, %v145
    %147 = vdwg.mxu0
    %148 = vmatpush.bf16.msra.mxu0 0
    %149 = vmatpush.bf16.msra.mxu0 0
    %150 = vmatpush.bf16.msra.mxu0 0
    %151 = vmatpush.bf16.msra.mxu0 0
    %152 = vmatpush.bf16.msra.mxu0 0
    %153 = vmatpush.bf16.msra.mxu0 0
    %154 = vmatpush.bf16.msra.mxu0 %v63
    %155 = vmatpush.bf16.msra.mxu0 %v61
    %156 = vmatmul.bf16.gmra.mxu0 %v124
    %v157 = vpop.f32.mrf.mxu0
    %v158 = vadd.f32 %v104, %v157
    %v159 = vpop.f32.mrf.mxu0
    %v160 = vadd.f32 %v106, %v159
    %161 = vmatmul.bf16.gmra.mxu0 %v127
    %v162 = vpop.f32.mrf.mxu0
    %v163 = vadd.f32 %v109, %v162
    %v164 = vpop.f32.mrf.mxu0
    %v165 = vadd.f32 %v111, %v164
    %166 = vdwg.mxu0
    %v171 = vunpack.c.l.b16 %v44
    %v172 = vunpack.c.h.b16 %v44
    %v173 = vunpack.c.l.b16 %v45
    %v174 = vunpack.c.h.b16 %v45
    %v175 = vunpack.c.l.b16 %v46
    %v176 = vunpack.c.h.b16 %v46
    %v177 = vunpack.c.l.b16 %v47
    %v178 = vunpack.c.h.b16 %v47
    %v179 = vpack.c.b16 %v173, %v171
    %v180 = vpack.c.b16 %v174, %v172
    %v181 = vpack.c.b16 %v177, %v175
    %v182 = vpack.c.b16 %v178, %v176
    %187 = vmatpush.bf16.msra.mxu0 0
    %188 = vmatpush.bf16.msra.mxu0 0
    %189 = vmatpush.bf16.msra.mxu0 0
    %190 = vmatpush.bf16.msra.mxu0 0
    %191 = vmatpush.bf16.msra.mxu0 0
    %192 = vmatpush.bf16.msra.mxu0 0
    %193 = vmatpush.bf16.msra.mxu0 %v181
    %194 = vmatpush.bf16.msra.mxu0 %v179
    %195 = vmatmul.bf16.gmra.mxu0 %v70
    %v196 = vpop.f32.mrf.mxu0
    %v197 = vadd.f32 0.0, %v196
    %v198 = vpop.f32.mrf.mxu0
    %v199 = vadd.f32 0.0, %v198
    %200 = vmatmul.bf16.gmra.mxu0 %v73
    %v201 = vpop.f32.mrf.mxu0
    %v202 = vadd.f32 0.0, %v201
    %v203 = vpop.f32.mrf.mxu0
    %v204 = vadd.f32 0.0, %v203
    %205 = vdwg.mxu0
    %206 = vmatpush.bf16.msra.mxu0 0
    %207 = vmatpush.bf16.msra.mxu0 0
    %208 = vmatpush.bf16.msra.mxu0 0
    %209 = vmatpush.bf16.msra.mxu0 0
    %210 = vmatpush.bf16.msra.mxu0 0
    %211 = vmatpush.bf16.msra.mxu0 0
    %212 = vmatpush.bf16.msra.mxu0 %v182
    %213 = vmatpush.bf16.msra.mxu0 %v180
    %214 = vmatmul.bf16.gmra.mxu0 %v70
    %v215 = vpop.f32.mrf.mxu0
    %v216 = vadd.f32 0.0, %v215
    %v217 = vpop.f32.mrf.mxu0
    %v218 = vadd.f32 0.0, %v217
    %219 = vmatmul.bf16.gmra.mxu0 %v73
    %v220 = vpop.f32.mrf.mxu0
    %v221 = vadd.f32 0.0, %v220
    %v222 = vpop.f32.mrf.mxu0
    %v223 = vadd.f32 0.0, %v222
    %224 = vdwg.mxu0
    %225 = vmatpush.bf16.msra.mxu0 0
    %226 = vmatpush.bf16.msra.mxu0 0
    %227 = vmatpush.bf16.msra.mxu0 0
    %228 = vmatpush.bf16.msra.mxu0 0
    %229 = vmatpush.bf16.msra.mxu0 0
    %230 = vmatpush.bf16.msra.mxu0 0
    %231 = vmatpush.bf16.msra.mxu0 %v181
    %232 = vmatpush.bf16.msra.mxu0 %v179
    %233 = vmatmul.bf16.gmra.mxu0 %v124
    %v234 = vpop.f32.mrf.mxu0
    %v235 = vadd.f32 %v197, %v234
    %v236 = vpop.f32.mrf.mxu0
    %v237 = vadd.f32 %v199, %v236
    %238 = vmatmul.bf16.gmra.mxu0 %v127
    %v239 = vpop.f32.mrf.mxu0
    %v240 = vadd.f32 %v202, %v239
    %v241 = vpop.f32.mrf.mxu0
    %v242 = vadd.f32 %v204, %v241
    %243 = vdwg.mxu0
    %244 = vmatpush.bf16.msra.mxu0 0
    %245 = vmatpush.bf16.msra.mxu0 0
    %246 = vmatpush.bf16.msra.mxu0 0
    %247 = vmatpush.bf16.msra.mxu0 0
    %248 = vmatpush.bf16.msra.mxu0 0
    %249 = vmatpush.bf16.msra.mxu0 0
    %250 = vmatpush.bf16.msra.mxu0 %v182
    %251 = vmatpush.bf16.msra.mxu0 %v180
    %252 = vmatmul.bf16.gmra.mxu0 %v124
    %v253 = vpop.f32.mrf.mxu0
    %v254 = vadd.f32 %v216, %v253
    %v255 = vpop.f32.mrf.mxu0
    %v256 = vadd.f32 %v218, %v255
    %257 = vmatmul.bf16.gmra.mxu0 %v127
    %v258 = vpop.f32.mrf.mxu0
    %v259 = vadd.f32 %v221, %v258
    %v260 = vpop.f32.mrf.mxu0
    %v261 = vadd.f32 %v223, %v260
    %262 = vdwg.mxu0
    %v263 = vmul.f32 %v139, %v235
    %v264 = vmul.f32 %v158, %v254
    %v265 = vmul.f32 %v141, %v237
    %v266 = vmul.f32 %v160, %v256
    %v267 = vmul.f32 %v144, %v240
    %v268 = vmul.f32 %v163, %v259
    %v269 = vmul.f32 %v146, %v242
    %v270 = vmul.f32 %v165, %v261
    %v271 = vpack.c.bf16 %v264, %v263
    %v272 = vpack.c.bf16 %v266, %v265
    %v273 = vpack.c.bf16 %v268, %v267
    %v274 = vpack.c.bf16 %v270, %v269
    %v275 = vunpack.c.l.bf16 %v271
    %v276 = vunpack.c.h.bf16 %v271
    %v277 = vunpack.c.l.bf16 %v272
    %v278 = vunpack.c.h.bf16 %v272
    %v279 = vunpack.c.l.bf16 %v273
    %v280 = vunpack.c.h.bf16 %v273
    %v281 = vunpack.c.l.bf16 %v274
    %v282 = vunpack.c.h.bf16 %v274
    %v283 = vsub.f32 %v263, %v275
    %v284 = vsub.f32 %v264, %v276
    %v285 = vsub.f32 %v265, %v277
    %v286 = vsub.f32 %v266, %v278
    %v287 = vsub.f32 %v267, %v279
    %v288 = vsub.f32 %v268, %v280
    %v289 = vsub.f32 %v269, %v281
    %v290 = vsub.f32 %v270, %v282
    %v291 = vpack.c.bf16 %v285, %v283
    %v292 = vpack.c.bf16 %v286, %v284
    %v293 = vpack.c.bf16 %v289, %v287
    %v294 = vpack.c.bf16 %v290, %v288
    %v295 = vld [vmem:[%s3] sm:$0xff]
    %v296 = vld [vmem:[%s3 + $0x8] sm:$0xff]
    %v297 = vld [vmem:[%s3 + $0x10] sm:$0xff]
    %v298 = vld [vmem:[%s3 + $0x18] sm:$0xff]
    %v299 = vld [vmem:[%s3 + $0x20] sm:$0xff]
    %v300 = vld [vmem:[%s3 + $0x28] sm:$0xff]
    %v301 = vld [vmem:[%s3 + $0x30] sm:$0xff]
    %v302 = vld [vmem:[%s3 + $0x38] sm:$0xff]
    %v303 = vld [vmem:[%s3 + $0x40] sm:$0xff]
    %v304 = vld [vmem:[%s3 + $0x48] sm:$0xff]
    %v305 = vld [vmem:[%s3 + $0x50] sm:$0xff]
    %v306 = vld [vmem:[%s3 + $0x58] sm:$0xff]
    %v307 = vld [vmem:[%s3 + $0x60] sm:$0xff]
    %v308 = vld [vmem:[%s3 + $0x68] sm:$0xff]
    %v309 = vld [vmem:[%s3 + $0x70] sm:$0xff]
    %v310 = vld [vmem:[%s3 + $0x78] sm:$0xff]
    %v311 = vld [vmem:[%s3 + $0x80] sm:$0xff]
    %v312 = vld [vmem:[%s3 + $0x88] sm:$0xff]
    %v313 = vld [vmem:[%s3 + $0x90] sm:$0xff]
    %v314 = vld [vmem:[%s3 + $0x98] sm:$0xff]
    %v315 = vld [vmem:[%s3 + $0xa0] sm:$0xff]
    %v316 = vld [vmem:[%s3 + $0xa8] sm:$0xff]
    %v317 = vld [vmem:[%s3 + $0xb0] sm:$0xff]
    %v318 = vld [vmem:[%s3 + $0xb8] sm:$0xff]
    %v319 = vld [vmem:[%s3 + $0xc0] sm:$0xff]
    %v320 = vld [vmem:[%s3 + $0xc8] sm:$0xff]
    %v321 = vld [vmem:[%s3 + $0xd0] sm:$0xff]
    %v322 = vld [vmem:[%s3 + $0xd8] sm:$0xff]
    %v323 = vld [vmem:[%s3 + $0xe0] sm:$0xff]
    %v324 = vld [vmem:[%s3 + $0xe8] sm:$0xff]
    %v325 = vld [vmem:[%s3 + $0xf0] sm:$0xff]
    %v326 = vld [vmem:[%s3 + $0xf8] sm:$0xff]
    %v327 = vld [vmem:[%s4] sm:$0xff]
    %v328 = vld [vmem:[%s4 + $0x8] sm:$0xff]
    %v329 = vld [vmem:[%s4 + $0x10] sm:$0xff]
    %v330 = vld [vmem:[%s4 + $0x18] sm:$0xff]
    %v331 = vld [vmem:[%s4 + $0x20] sm:$0xff]
    %v332 = vld [vmem:[%s4 + $0x28] sm:$0xff]
    %v333 = vld [vmem:[%s4 + $0x30] sm:$0xff]
    %v334 = vld [vmem:[%s4 + $0x38] sm:$0xff]
    %v335 = vld [vmem:[%s4 + $0x40] sm:$0xff]
    %v336 = vld [vmem:[%s4 + $0x48] sm:$0xff]
    %v337 = vld [vmem:[%s4 + $0x50] sm:$0xff]
    %v338 = vld [vmem:[%s4 + $0x58] sm:$0xff]
    %v339 = vld [vmem:[%s4 + $0x60] sm:$0xff]
    %v340 = vld [vmem:[%s4 + $0x68] sm:$0xff]
    %v341 = vld [vmem:[%s4 + $0x70] sm:$0xff]
    %v342 = vld [vmem:[%s4 + $0x78] sm:$0xff]
    %v343 = vld [vmem:[%s4 + $0x80] sm:$0xff]
    %v344 = vld [vmem:[%s4 + $0x88] sm:$0xff]
    %v345 = vld [vmem:[%s4 + $0x90] sm:$0xff]
    %v346 = vld [vmem:[%s4 + $0x98] sm:$0xff]
    %v347 = vld [vmem:[%s4 + $0xa0] sm:$0xff]
    %v348 = vld [vmem:[%s4 + $0xa8] sm:$0xff]
    %v349 = vld [vmem:[%s4 + $0xb0] sm:$0xff]
    %v350 = vld [vmem:[%s4 + $0xb8] sm:$0xff]
    %v351 = vld [vmem:[%s4 + $0xc0] sm:$0xff]
    %v352 = vld [vmem:[%s4 + $0xc8] sm:$0xff]
    %v353 = vld [vmem:[%s4 + $0xd0] sm:$0xff]
    %v354 = vld [vmem:[%s4 + $0xd8] sm:$0xff]
    %v355 = vld [vmem:[%s4 + $0xe0] sm:$0xff]
    %v356 = vld [vmem:[%s4 + $0xe8] sm:$0xff]
    %v357 = vld [vmem:[%s4 + $0xf0] sm:$0xff]
    %v358 = vld [vmem:[%s4 + $0xf8] sm:$0xff]
    %v391 = vunpack.c.l.b16 %v295
    %v392 = vunpack.c.h.b16 %v295
    %v393 = vunpack.c.l.b16 %v296
    %v394 = vunpack.c.h.b16 %v296
    %v395 = vunpack.c.l.b16 %v297
    %v396 = vunpack.c.h.b16 %v297
    %v397 = vunpack.c.l.b16 %v298
    %v398 = vunpack.c.h.b16 %v298
    %v399 = vunpack.c.l.b16 %v299
    %v400 = vunpack.c.h.b16 %v299
    %v401 = vunpack.c.l.b16 %v300
    %v402 = vunpack.c.h.b16 %v300
    %v403 = vunpack.c.l.b16 %v301
    %v404 = vunpack.c.h.b16 %v301
    %v405 = vunpack.c.l.b16 %v302
    %v406 = vunpack.c.h.b16 %v302
    %v407 = vunpack.c.l.b16 %v303
    %v408 = vunpack.c.h.b16 %v303
    %v409 = vunpack.c.l.b16 %v304
    %v410 = vunpack.c.h.b16 %v304
    %v411 = vunpack.c.l.b16 %v305
    %v412 = vunpack.c.h.b16 %v305
    %v413 = vunpack.c.l.b16 %v306
    %v414 = vunpack.c.h.b16 %v306
    %v415 = vunpack.c.l.b16 %v307
    %v416 = vunpack.c.h.b16 %v307
    %v417 = vunpack.c.l.b16 %v308
    %v418 = vunpack.c.h.b16 %v308
    %v419 = vunpack.c.l.b16 %v309
    %v420 = vunpack.c.h.b16 %v309
    %v421 = vunpack.c.l.b16 %v310
    %v422 = vunpack.c.h.b16 %v310
    %v423 = vunpack.c.l.b16 %v311
    %v424 = vunpack.c.h.b16 %v311
    %v425 = vunpack.c.l.b16 %v312
    %v426 = vunpack.c.h.b16 %v312
    %v427 = vunpack.c.l.b16 %v313
    %v428 = vunpack.c.h.b16 %v313
    %v429 = vunpack.c.l.b16 %v314
    %v430 = vunpack.c.h.b16 %v314
    %v431 = vunpack.c.l.b16 %v315
    %v432 = vunpack.c.h.b16 %v315
    %v433 = vunpack.c.l.b16 %v316
    %v434 = vunpack.c.h.b16 %v316
    %v435 = vunpack.c.l.b16 %v317
    %v436 = vunpack.c.h.b16 %v317
    %v437 = vunpack.c.l.b16 %v318
    %v438 = vunpack.c.h.b16 %v318
    %v439 = vunpack.c.l.b16 %v319
    %v440 = vunpack.c.h.b16 %v319
    %v441 = vunpack.c.l.b16 %v320
    %v442 = vunpack.c.h.b16 %v320
    %v443 = vunpack.c.l.b16 %v321
    %v444 = vunpack.c.h.b16 %v321
    %v445 = vunpack.c.l.b16 %v322
    %v446 = vunpack.c.h.b16 %v322
    %v447 = vunpack.c.l.b16 %v323
    %v448 = vunpack.c.h.b16 %v323
    %v449 = vunpack.c.l.b16 %v324
    %v450 = vunpack.c.h.b16 %v324
    %v451 = vunpack.c.l.b16 %v325
    %v452 = vunpack.c.h.b16 %v325
    %v453 = vunpack.c.l.b16 %v326
    %v454 = vunpack.c.h.b16 %v326
    %v455 = vpack.c.b16 %v393, %v391
    %v456 = vpack.c.b16 %v394, %v392
    %v457 = vpack.c.b16 %v397, %v395
    %v458 = vpack.c.b16 %v398, %v396
    %v459 = vpack.c.b16 %v401, %v399
    %v460 = vpack.c.b16 %v402, %v400
    %v461 = vpack.c.b16 %v405, %v403
    %v462 = vpack.c.b16 %v406, %v404
    %v463 = vpack.c.b16 %v409, %v407
    %v464 = vpack.c.b16 %v410, %v408
    %v465 = vpack.c.b16 %v413, %v411
    %v466 = vpack.c.b16 %v414, %v412
    %v467 = vpack.c.b16 %v417, %v415
    %v468 = vpack.c.b16 %v418, %v416
    %v469 = vpack.c.b16 %v421, %v419
    %v470 = vpack.c.b16 %v422, %v420
    %v471 = vpack.c.b16 %v425, %v423
    %v472 = vpack.c.b16 %v426, %v424
    %v473 = vpack.c.b16 %v429, %v427
    %v474 = vpack.c.b16 %v430, %v428
    %v475 = vpack.c.b16 %v433, %v431
    %v476 = vpack.c.b16 %v434, %v432
    %v477 = vpack.c.b16 %v437, %v435
    %v478 = vpack.c.b16 %v438, %v436
    %v479 = vpack.c.b16 %v441, %v439
    %v480 = vpack.c.b16 %v442, %v440
    %v481 = vpack.c.b16 %v445, %v443
    %v482 = vpack.c.b16 %v446, %v444
    %v483 = vpack.c.b16 %v449, %v447
    %v484 = vpack.c.b16 %v450, %v448
    %v485 = vpack.c.b16 %v453, %v451
    %v486 = vpack.c.b16 %v454, %v452
    %519 = vmatpush.bf16.msra.mxu0 %v469
    %520 = vmatpush.bf16.msra.mxu0 %v467
    %521 = vmatpush.bf16.msra.mxu0 %v465
    %522 = vmatpush.bf16.msra.mxu0 %v463
    %523 = vmatpush.bf16.msra.mxu0 %v461
    %524 = vmatpush.bf16.msra.mxu0 %v459
    %525 = vmatpush.bf16.msra.mxu0 %v457
    %526 = vmatpush.bf16.msra.mxu0 %v455
    %527 = vmatmul.bf16.gmra.mxu0 %v291
    %v528 = vpop.f32.mrf.mxu0
    %v529 = vadd.f32 0.0, %v528
    %v530 = vpop.f32.mrf.mxu0
    %v531 = vadd.f32 0.0, %v530
    %532 = vmatmul.bf16.gmra.mxu0 %v293
    %v533 = vpop.f32.mrf.mxu0
    %v534 = vadd.f32 0.0, %v533
    %v535 = vpop.f32.mrf.mxu0
    %v536 = vadd.f32 0.0, %v535
    %537 = vdwg.mxu0
    %538 = vmatpush.bf16.msra.mxu0 %v485
    %539 = vmatpush.bf16.msra.mxu0 %v483
    %540 = vmatpush.bf16.msra.mxu0 %v481
    %541 = vmatpush.bf16.msra.mxu0 %v479
    %542 = vmatpush.bf16.msra.mxu0 %v477
    %543 = vmatpush.bf16.msra.mxu0 %v475
    %544 = vmatpush.bf16.msra.mxu0 %v473
    %545 = vmatpush.bf16.msra.mxu0 %v471
    %546 = vmatmul.bf16.gmra.mxu0 %v292
    %v547 = vpop.f32.mrf.mxu0
    %v548 = vadd.f32 %v529, %v547
    %v549 = vpop.f32.mrf.mxu0
    %v550 = vadd.f32 %v531, %v549
    %551 = vmatmul.bf16.gmra.mxu0 %v294
    %v552 = vpop.f32.mrf.mxu0
    %v553 = vadd.f32 %v534, %v552
    %v554 = vpop.f32.mrf.mxu0
    %v555 = vadd.f32 %v536, %v554
    %556 = vdwg.mxu0
    %557 = vmatpush.bf16.msra.mxu0 %v470
    %558 = vmatpush.bf16.msra.mxu0 %v468
    %559 = vmatpush.bf16.msra.mxu0 %v466
    %560 = vmatpush.bf16.msra.mxu0 %v464
    %561 = vmatpush.bf16.msra.mxu0 %v462
    %562 = vmatpush.bf16.msra.mxu0 %v460
    %563 = vmatpush.bf16.msra.mxu0 %v458
    %564 = vmatpush.bf16.msra.mxu0 %v456
    %565 = vmatmul.bf16.gmra.mxu0 %v291
    %v566 = vpop.f32.mrf.mxu0
    %v567 = vadd.f32 0.0, %v566
    %v568 = vpop.f32.mrf.mxu0
    %v569 = vadd.f32 0.0, %v568
    %570 = vmatmul.bf16.gmra.mxu0 %v293
    %v571 = vpop.f32.mrf.mxu0
    %v572 = vadd.f32 0.0, %v571
    %v573 = vpop.f32.mrf.mxu0
    %v574 = vadd.f32 0.0, %v573
    %575 = vdwg.mxu0
    %576 = vmatpush.bf16.msra.mxu0 %v486
    %577 = vmatpush.bf16.msra.mxu0 %v484
    %578 = vmatpush.bf16.msra.mxu0 %v482
    %579 = vmatpush.bf16.msra.mxu0 %v480
    %580 = vmatpush.bf16.msra.mxu0 %v478
    %581 = vmatpush.bf16.msra.mxu0 %v476
    %582 = vmatpush.bf16.msra.mxu0 %v474
    %583 = vmatpush.bf16.msra.mxu0 %v472
    %584 = vmatmul.bf16.gmra.mxu0 %v292
    %v585 = vpop.f32.mrf.mxu0
    %v586 = vadd.f32 %v567, %v585
    %v587 = vpop.f32.mrf.mxu0
    %v588 = vadd.f32 %v569, %v587
    %589 = vmatmul.bf16.gmra.mxu0 %v294
    %v590 = vpop.f32.mrf.mxu0
    %v591 = vadd.f32 %v572, %v590
    %v592 = vpop.f32.mrf.mxu0
    %v593 = vadd.f32 %v574, %v592
    %594 = vdwg.mxu0
    %v599 = vunpack.c.l.b16 %v271
    %v600 = vunpack.c.h.b16 %v271
    %v601 = vunpack.c.l.b16 %v272
    %v602 = vunpack.c.h.b16 %v272
    %v603 = vunpack.c.l.b16 %v273
    %v604 = vunpack.c.h.b16 %v273
    %v605 = vunpack.c.l.b16 %v274
    %v606 = vunpack.c.h.b16 %v274
    %v607 = vpack.c.b16 %v601, %v599
    %v608 = vpack.c.b16 %v602, %v600
    %v609 = vpack.c.b16 %v605, %v603
    %v610 = vpack.c.b16 %v606, %v604
    %615 = vmatpush.bf16.msra.mxu0 %v469
    %616 = vmatpush.bf16.msra.mxu0 %v467
    %617 = vmatpush.bf16.msra.mxu0 %v465
    %618 = vmatpush.bf16.msra.mxu0 %v463
    %619 = vmatpush.bf16.msra.mxu0 %v461
    %620 = vmatpush.bf16.msra.mxu0 %v459
    %621 = vmatpush.bf16.msra.mxu0 %v457
    %622 = vmatpush.bf16.msra.mxu0 %v455
    %623 = vmatmul.bf16.gmra.mxu0 %v607
    %v624 = vpop.f32.mrf.mxu0
    %v625 = vadd.f32 %v548, %v624
    %v626 = vpop.f32.mrf.mxu0
    %v627 = vadd.f32 %v550, %v626
    %628 = vmatmul.bf16.gmra.mxu0 %v609
    %v629 = vpop.f32.mrf.mxu0
    %v630 = vadd.f32 %v553, %v629
    %v631 = vpop.f32.mrf.mxu0
    %v632 = vadd.f32 %v555, %v631
    %633 = vdwg.mxu0
    %634 = vmatpush.bf16.msra.mxu0 %v485
    %635 = vmatpush.bf16.msra.mxu0 %v483
    %636 = vmatpush.bf16.msra.mxu0 %v481
    %637 = vmatpush.bf16.msra.mxu0 %v479
    %638 = vmatpush.bf16.msra.mxu0 %v477
    %639 = vmatpush.bf16.msra.mxu0 %v475
    %640 = vmatpush.bf16.msra.mxu0 %v473
    %641 = vmatpush.bf16.msra.mxu0 %v471
    %642 = vmatmul.bf16.gmra.mxu0 %v608
    %v643 = vpop.f32.mrf.mxu0
    %v644 = vadd.f32 %v625, %v643
    %v645 = vpop.f32.mrf.mxu0
    %v646 = vadd.f32 %v627, %v645
    %647 = vmatmul.bf16.gmra.mxu0 %v610
    %v648 = vpop.f32.mrf.mxu0
    %v649 = vadd.f32 %v630, %v648
    %v650 = vpop.f32.mrf.mxu0
    %v651 = vadd.f32 %v632, %v650
    %652 = vdwg.mxu0
    %653 = vmatpush.bf16.msra.mxu0 %v470
    %654 = vmatpush.bf16.msra.mxu0 %v468
    %655 = vmatpush.bf16.msra.mxu0 %v466
    %656 = vmatpush.bf16.msra.mxu0 %v464
    %657 = vmatpush.bf16.msra.mxu0 %v462
    %658 = vmatpush.bf16.msra.mxu0 %v460
    %659 = vmatpush.bf16.msra.mxu0 %v458
    %660 = vmatpush.bf16.msra.mxu0 %v456
    %661 = vmatmul.bf16.gmra.mxu0 %v607
    %v662 = vpop.f32.mrf.mxu0
    %v663 = vadd.f32 %v586, %v662
    %v664 = vpop.f32.mrf.mxu0
    %v665 = vadd.f32 %v588, %v664
    %666 = vmatmul.bf16.gmra.mxu0 %v609
    %v667 = vpop.f32.mrf.mxu0
    %v668 = vadd.f32 %v591, %v667
    %v669 = vpop.f32.mrf.mxu0
    %v670 = vadd.f32 %v593, %v669
    %671 = vdwg.mxu0
    %672 = vmatpush.bf16.msra.mxu0 %v486
    %673 = vmatpush.bf16.msra.mxu0 %v484
    %674 = vmatpush.bf16.msra.mxu0 %v482
    %675 = vmatpush.bf16.msra.mxu0 %v480
    %676 = vmatpush.bf16.msra.mxu0 %v478
    %677 = vmatpush.bf16.msra.mxu0 %v476
    %678 = vmatpush.bf16.msra.mxu0 %v474
    %679 = vmatpush.bf16.msra.mxu0 %v472
    %680 = vmatmul.bf16.gmra.mxu0 %v608
    %v681 = vpop.f32.mrf.mxu0
    %v682 = vadd.f32 %v663, %v681
    %v683 = vpop.f32.mrf.mxu0
    %v684 = vadd.f32 %v665, %v683
    %685 = vmatmul.bf16.gmra.mxu0 %v610
    %v686 = vpop.f32.mrf.mxu0
    %v687 = vadd.f32 %v668, %v686
    %v688 = vpop.f32.mrf.mxu0
    %v689 = vadd.f32 %v670, %v688
    %690 = vdwg.mxu0
    %v723 = vunpack.c.l.b16 %v327
    %v724 = vunpack.c.h.b16 %v327
    %v725 = vunpack.c.l.b16 %v328
    %v726 = vunpack.c.h.b16 %v328
    %v727 = vunpack.c.l.b16 %v329
    %v728 = vunpack.c.h.b16 %v329
    %v729 = vunpack.c.l.b16 %v330
    %v730 = vunpack.c.h.b16 %v330
    %v731 = vunpack.c.l.b16 %v331
    %v732 = vunpack.c.h.b16 %v331
    %v733 = vunpack.c.l.b16 %v332
    %v734 = vunpack.c.h.b16 %v332
    %v735 = vunpack.c.l.b16 %v333
    %v736 = vunpack.c.h.b16 %v333
    %v737 = vunpack.c.l.b16 %v334
    %v738 = vunpack.c.h.b16 %v334
    %v739 = vunpack.c.l.b16 %v335
    %v740 = vunpack.c.h.b16 %v335
    %v741 = vunpack.c.l.b16 %v336
    %v742 = vunpack.c.h.b16 %v336
    %v743 = vunpack.c.l.b16 %v337
    %v744 = vunpack.c.h.b16 %v337
    %v745 = vunpack.c.l.b16 %v338
    %v746 = vunpack.c.h.b16 %v338
    %v747 = vunpack.c.l.b16 %v339
    %v748 = vunpack.c.h.b16 %v339
    %v749 = vunpack.c.l.b16 %v340
    %v750 = vunpack.c.h.b16 %v340
    %v751 = vunpack.c.l.b16 %v341
    %v752 = vunpack.c.h.b16 %v341
    %v753 = vunpack.c.l.b16 %v342
    %v754 = vunpack.c.h.b16 %v342
    %v755 = vunpack.c.l.b16 %v343
    %v756 = vunpack.c.h.b16 %v343
    %v757 = vunpack.c.l.b16 %v344
    %v758 = vunpack.c.h.b16 %v344
    %v759 = vunpack.c.l.b16 %v345
    %v760 = vunpack.c.h.b16 %v345
    %v761 = vunpack.c.l.b16 %v346
    %v762 = vunpack.c.h.b16 %v346
    %v763 = vunpack.c.l.b16 %v347
    %v764 = vunpack.c.h.b16 %v347
    %v765 = vunpack.c.l.b16 %v348
    %v766 = vunpack.c.h.b16 %v348
    %v767 = vunpack.c.l.b16 %v349
    %v768 = vunpack.c.h.b16 %v349
    %v769 = vunpack.c.l.b16 %v350
    %v770 = vunpack.c.h.b16 %v350
    %v771 = vunpack.c.l.b16 %v351
    %v772 = vunpack.c.h.b16 %v351
    %v773 = vunpack.c.l.b16 %v352
    %v774 = vunpack.c.h.b16 %v352
    %v775 = vunpack.c.l.b16 %v353
    %v776 = vunpack.c.h.b16 %v353
    %v777 = vunpack.c.l.b16 %v354
    %v778 = vunpack.c.h.b16 %v354
    %v779 = vunpack.c.l.b16 %v355
    %v780 = vunpack.c.h.b16 %v355
    %v781 = vunpack.c.l.b16 %v356
    %v782 = vunpack.c.h.b16 %v356
    %v783 = vunpack.c.l.b16 %v357
    %v784 = vunpack.c.h.b16 %v357
    %v785 = vunpack.c.l.b16 %v358
    %v786 = vunpack.c.h.b16 %v358
    %v787 = vpack.c.b16 %v725, %v723
    %v788 = vpack.c.b16 %v726, %v724
    %v789 = vpack.c.b16 %v729, %v727
    %v790 = vpack.c.b16 %v730, %v728
    %v791 = vpack.c.b16 %v733, %v731
    %v792 = vpack.c.b16 %v734, %v732
    %v793 = vpack.c.b16 %v737, %v735
    %v794 = vpack.c.b16 %v738, %v736
    %v795 = vpack.c.b16 %v741, %v739
    %v796 = vpack.c.b16 %v742, %v740
    %v797 = vpack.c.b16 %v745, %v743
    %v798 = vpack.c.b16 %v746, %v744
    %v799 = vpack.c.b16 %v749, %v747
    %v800 = vpack.c.b16 %v750, %v748
    %v801 = vpack.c.b16 %v753, %v751
    %v802 = vpack.c.b16 %v754, %v752
    %v803 = vpack.c.b16 %v757, %v755
    %v804 = vpack.c.b16 %v758, %v756
    %v805 = vpack.c.b16 %v761, %v759
    %v806 = vpack.c.b16 %v762, %v760
    %v807 = vpack.c.b16 %v765, %v763
    %v808 = vpack.c.b16 %v766, %v764
    %v809 = vpack.c.b16 %v769, %v767
    %v810 = vpack.c.b16 %v770, %v768
    %v811 = vpack.c.b16 %v773, %v771
    %v812 = vpack.c.b16 %v774, %v772
    %v813 = vpack.c.b16 %v777, %v775
    %v814 = vpack.c.b16 %v778, %v776
    %v815 = vpack.c.b16 %v781, %v779
    %v816 = vpack.c.b16 %v782, %v780
    %v817 = vpack.c.b16 %v785, %v783
    %v818 = vpack.c.b16 %v786, %v784
    %851 = vmatpush.bf16.msra.mxu0 %v801
    %852 = vmatpush.bf16.msra.mxu0 %v799
    %853 = vmatpush.bf16.msra.mxu0 %v797
    %854 = vmatpush.bf16.msra.mxu0 %v795
    %855 = vmatpush.bf16.msra.mxu0 %v793
    %856 = vmatpush.bf16.msra.mxu0 %v791
    %857 = vmatpush.bf16.msra.mxu0 %v789
    %858 = vmatpush.bf16.msra.mxu0 %v787
    %859 = vmatmul.bf16.gmra.mxu0 %v607
    %v860 = vpop.f32.mrf.mxu0
    %v861 = vadd.f32 0.0, %v860
    %v862 = vpop.f32.mrf.mxu0
    %v863 = vadd.f32 0.0, %v862
    %864 = vmatmul.bf16.gmra.mxu0 %v609
    %v865 = vpop.f32.mrf.mxu0
    %v866 = vadd.f32 0.0, %v865
    %v867 = vpop.f32.mrf.mxu0
    %v868 = vadd.f32 0.0, %v867
    %869 = vdwg.mxu0
    %870 = vmatpush.bf16.msra.mxu0 %v817
    %871 = vmatpush.bf16.msra.mxu0 %v815
    %872 = vmatpush.bf16.msra.mxu0 %v813
    %873 = vmatpush.bf16.msra.mxu0 %v811
    %874 = vmatpush.bf16.msra.mxu0 %v809
    %875 = vmatpush.bf16.msra.mxu0 %v807
    %876 = vmatpush.bf16.msra.mxu0 %v805
    %877 = vmatpush.bf16.msra.mxu0 %v803
    %878 = vmatmul.bf16.gmra.mxu0 %v608
    %v879 = vpop.f32.mrf.mxu0
    %v880 = vadd.f32 %v861, %v879
    %v881 = vpop.f32.mrf.mxu0
    %v882 = vadd.f32 %v863, %v881
    %883 = vmatmul.bf16.gmra.mxu0 %v610
    %v884 = vpop.f32.mrf.mxu0
    %v885 = vadd.f32 %v866, %v884
    %v886 = vpop.f32.mrf.mxu0
    %v887 = vadd.f32 %v868, %v886
    %888 = vdwg.mxu0
    %889 = vmatpush.bf16.msra.mxu0 %v802
    %890 = vmatpush.bf16.msra.mxu0 %v800
    %891 = vmatpush.bf16.msra.mxu0 %v798
    %892 = vmatpush.bf16.msra.mxu0 %v796
    %893 = vmatpush.bf16.msra.mxu0 %v794
    %894 = vmatpush.bf16.msra.mxu0 %v792
    %895 = vmatpush.bf16.msra.mxu0 %v790
    %896 = vmatpush.bf16.msra.mxu0 %v788
    %897 = vmatmul.bf16.gmra.mxu0 %v607
    %v898 = vpop.f32.mrf.mxu0
    %v899 = vadd.f32 0.0, %v898
    %v900 = vpop.f32.mrf.mxu0
    %v901 = vadd.f32 0.0, %v900
    %902 = vmatmul.bf16.gmra.mxu0 %v609
    %v903 = vpop.f32.mrf.mxu0
    %v904 = vadd.f32 0.0, %v903
    %v905 = vpop.f32.mrf.mxu0
    %v906 = vadd.f32 0.0, %v905
    %907 = vdwg.mxu0
    %908 = vmatpush.bf16.msra.mxu0 %v818
    %909 = vmatpush.bf16.msra.mxu0 %v816
    %910 = vmatpush.bf16.msra.mxu0 %v814
    %911 = vmatpush.bf16.msra.mxu0 %v812
    %912 = vmatpush.bf16.msra.mxu0 %v810
    %913 = vmatpush.bf16.msra.mxu0 %v808
    %914 = vmatpush.bf16.msra.mxu0 %v806
    %915 = vmatpush.bf16.msra.mxu0 %v804
    %916 = vmatmul.bf16.gmra.mxu0 %v608
    %v917 = vpop.f32.mrf.mxu0
    %v918 = vadd.f32 %v899, %v917
    %v919 = vpop.f32.mrf.mxu0
    %v920 = vadd.f32 %v901, %v919
    %921 = vmatmul.bf16.gmra.mxu0 %v610
    %v922 = vpop.f32.mrf.mxu0
    %v923 = vadd.f32 %v904, %v922
    %v924 = vpop.f32.mrf.mxu0
    %v925 = vadd.f32 %v906, %v924
    %926 = vdwg.mxu0
    %v927 = vadd.f32 %v644, %v880
    %v928 = vadd.f32 %v682, %v918
    %v929 = vadd.f32 %v646, %v882
    %v930 = vadd.f32 %v684, %v920
    %v931 = vadd.f32 %v649, %v885
    %v932 = vadd.f32 %v687, %v923
    %v933 = vadd.f32 %v651, %v887
    %v934 = vadd.f32 %v689, %v925
    %935 = vst [vmem:[#allocation2] sm:$0xff] %v927
    %vm936 = vcmask 130048
    %937 = vst.msk [vmem:[#allocation2 + $0x8] sm:$0xff] %vm936, %v928
    %938 = vst [vmem:[#allocation2 + $0x10] sm:$0xff] %v929
    %939 = vst.msk [vmem:[#allocation2 + $0x18] sm:$0xff] %vm936, %v930
    %940 = vst [vmem:[#allocation2 + $0x20] sm:$0xff] %v931
    %941 = vst.msk [vmem:[#allocation2 + $0x28] sm:$0xff] %vm936, %v932
    %942 = vst [vmem:[#allocation2 + $0x30] sm:$0xff] %v933
    %943 = vst.msk [vmem:[#allocation2 + $0x38] sm:$0xff] %vm936, %v934
    // Predicated region
    $region22: #{tpu_custom_call.1} parent=1 // pred_check
      _
    $region23: #{tpu_custom_call.1} parent=1 // pred_check_branch
      %945 = sbr.rel (0) target = $region25
    $region24: #{tpu_custom_call.1} parent=1 // pred_region
      %947 = vsyncadd [#allocation3], 0
      %s948 = sshll.u32 [#allocation2], 4
      %s949 = int_to_ptr.vmem [resolvable:$true] %s948
      %s950 = sshll.u32 %s5, 4
      %s951 = int_to_ptr.hbm [resolvable:$true] %s950
      %956 = dma.vmem_to_hbm [thread:$0]  %s949, 1024, %s951, [#allocation3], 256, 256, 16
    $region25: #{tpu_custom_call.1} parent=1 // pred_fallthru
      _
    // Predicated region
    $region26: #{tpu_custom_call.1} parent=1 // pred_check
      _
    $region27: #{tpu_custom_call.1} parent=1 // pred_check_branch
      %958 = sbr.rel (0) target = $region29
    $region28: #{tpu_custom_call.1} parent=1 // pred_region
      %960 = dma.done [#allocation3], 1024
    $region29: #{tpu_custom_call.1} parent=1 // pred_fallthru
      _
    %961 = vsyncpa [#allocation3], 1

</llo_original>
